<compile_context>
chip_gen: v5e
topology: v5e:2x2
jax: 0.10.0
libtpu: 0.0.40
codegen_flags: <defaults>
</compile_context>

<pallas_src>
import functools

import jax
import jax.numpy as jnp
from jax.experimental import pallas as pl
from jax.experimental.pallas import tpu as pltpu


def _f_forward_kernel(eps_ref, d_ref, l_ref, s_ref, b_ref, bs_ref, out_ref,
                      *, n, k, n_domains):
    """z^T = (I - L_d)^{-1} @ (S_d @ eps) + b_d, batch dense over (sublane, lane).

    eps_ref : (N, G, 128) VMEM  epsilon^T, batch split over sublanes x lanes
    d_ref   : (G, 128)    VMEM  int32 domain id per batch element
    l_ref   : (n_domains, M_L) SMEM  strictly-lower-tri table for the last k rows
    s_ref   : (n_domains, k)   SMEM  diagonal-tail table
    b_ref   : (n_domains, k)   SMEM  domain-specific bias table
    bs_ref  : (N - k,)         SMEM  shared bias for the first N-k rows
    out_ref : (N, G, 128) VMEM  z^T
    """
    d = d_ref[...]                                      # (G, 128) int32
    # One compare mask per non-zero domain; reused by every embedding select.
    masks = [d == dom for dom in range(1, n_domains)]

    def gather(table_ref, col, default):
        """Per-element table[d, col]; `default` is used for d == 0."""
        v = jnp.full(d.shape, default, jnp.float32)
        for dom_m1, m in enumerate(masks):
            v = jnp.where(m, table_ref[dom_m1 + 1, col], v)
        return v

    # Rows 0 .. N-k-1: L rows are zero and S is identity -> pass-through + bias.
    # Direct per-row (G, 128) stores keep the output lane-dense (no concatenate).
    for j in range(n - k):
        out_ref[j] = eps_ref[j] + bs_ref[j]

    # Rows N-k .. N-1: exact forward substitution (L strictly lower triangular):
    #   z_i = s_i * eps_i + sum_{j < i} L[i, j] * z_j
    # eps rows are re-loaded from VMEM on demand (cheap vld) so only the k-1 tail
    # partials are kept live -> bounded vreg pressure.
    tail_z = []                                         # pre-bias tail solutions
    off = 0
    for t in range(k):                                  # static unroll: k is tiny
        i = n - k + t
        acc = gather(s_ref, t, 1.0) * eps_ref[i]
        for j in range(i):
            lv = gather(l_ref, off + j, 0.0)            # L_0 == 0 for d == 0
            zj = eps_ref[j] if j < n - k else tail_z[j - (n - k)]
            acc = acc + lv * zj
        off += i
        tail_z.append(acc)
        # Bias is NOT masked at d == 0: it uses bias_emb[0] (row 0 of the table).
        out_ref[i] = acc + gather(b_ref, t, b_ref[0, t])


def _pick_b_tile(b_pad):
    """Per-grid-step batch tile (elements; always a multiple of 128 lanes)."""
    # Tiles are multiples of 1024 so the (rows, G, 128) blocks keep G a multiple of
    # 8 (full (8,128) vregs).  Prefer the largest tile in 1024..8192 that still
    # leaves >= 2 grid steps (v7x has two TensorCores and the pipeline needs
    # something to overlap); small / odd batches fall back to one full block.
    if b_pad % 1024 != 0 or b_pad == 1024:
        return b_pad
    for cand in (8192, 4096, 2048, 1024):
        if b_pad % cand == 0 and b_pad // cand >= 2:
            return cand
    return b_pad


def f_auto_spa_can_forward(params, epsilon, d, *, latent_dim, k_spa):
    """z = F_d @ epsilon + b_d  (matches torch F_auto_spa_can.forward)."""
    B = epsilon.shape[0]
    N, k = latent_dim, k_spa

    L_emb = params["L_emb"].astype(jnp.float32)           # (n_domains, M_L)
    S_emb = params["S_emb"].astype(jnp.float32)           # (n_domains, k)
    shared_bias = params["shared_bias"].astype(jnp.float32)   # (N - k,)
    bias_emb = params["bias_emb"].astype(jnp.float32)      # (n_domains, k)
    n_domains = L_emb.shape[0]

    # Pad the batch up to a multiple of 128 lanes (padding gets d=0 / eps=0 and is
    # sliced off at the end).
    b_pad = ((B + 127) // 128) * 128
    eps = epsilon.astype(jnp.float32)
    dom = d.astype(jnp.int32)
    if b_pad != B:
        eps = jnp.pad(eps, ((0, b_pad - B), (0, 0)))
        dom = jnp.pad(dom, (0, b_pad - B))

    # TODO(synk): callers that can produce/consume the (N, B) layout directly should
    # skip these two XLA transposes - they are the only HBM round-trips left outside
    # the kernel.
    eps3 = eps.T.reshape(N, b_pad // 128, 128)             # (N, G_total, 128)
    d2 = dom.reshape(b_pad // 128, 128)                    # (G_total, 128)

    b_tile = _pick_b_tile(b_pad)
    g_tile = b_tile // 128
    grid = (b_pad // b_tile,)

    vmem = pltpu.MemorySpace.VMEM
    smem = pltpu.MemorySpace.SMEM
    kernel = functools.partial(_f_forward_kernel, n=N, k=k, n_domains=n_domains)

    out3 = pl.pallas_call(
        kernel,
        out_shape=jax.ShapeDtypeStruct((N, b_pad // 128, 128), jnp.float32),
        grid_spec=pl.GridSpec(
            grid=grid,
            in_specs=[
                pl.BlockSpec((N, g_tile, 128), lambda b: (0, b, 0), memory_space=vmem),
                pl.BlockSpec((g_tile, 128), lambda b: (b, 0), memory_space=vmem),
                pl.BlockSpec(memory_space=smem),   # L_emb table
                pl.BlockSpec(memory_space=smem),   # S_emb table
                pl.BlockSpec(memory_space=smem),   # bias_emb table
                pl.BlockSpec(memory_space=smem),   # shared_bias
            ],
            out_specs=pl.BlockSpec((N, g_tile, 128), lambda b: (0, b, 0),
                                   memory_space=vmem),
        ),
        compiler_params=pltpu.CompilerParams(dimension_semantics=("parallel",)),
    )(eps3, d2, L_emb, S_emb, bias_emb, shared_bias)

    z = out3.reshape(N, b_pad)[:, :B].T                    # (B, N)
    # TODO(synk): return_jacobian=True path (log|det F_d| = sum_i log|S_d[i,i]|) not implemented.
    return z


def _reference_forward(params, epsilon, d, *, latent_dim, k_spa):
    """Pure-JAX mirror of the torch module (dense batched linalg.solve)."""
    N, k = latent_dim, k_spa
    B = epsilon.shape[0]
    rows = jnp.array([i for i in range(N - k, N) for _ in range(i)], dtype=jnp.int32)
    cols = jnp.array([j for i in range(N - k, N) for j in range(i)], dtype=jnp.int32)
    nz = (d != 0)
    L_vals = jnp.where(nz[:, None], params["L_emb"][d], 0.0)
    L = jnp.zeros((B, N, N), jnp.float32).at[:, rows, cols].set(L_vals)
    s_diag = jnp.ones((B, N), jnp.float32).at[:, N - k:].set(
        jnp.where(nz[:, None], params["S_emb"][d], 1.0))
    S = jnp.zeros((B, N, N), jnp.float32).at[:, jnp.arange(N), jnp.arange(N)].set(s_diag)
    F = jnp.linalg.solve(jnp.eye(N, dtype=jnp.float32)[None] - L, S)    # (B, N, N)
    bias = jnp.concatenate(
        [jnp.broadcast_to(params["shared_bias"], (B, N - k)), params["bias_emb"][d]],
        axis=-1)
    return jnp.einsum("bij,bj->bi", F, epsilon) + bias


if __name__ == "__main__":
    # config: latent_dim=8, k_spa=3, n_domains=4, no_model_bias=False, no_model_s=False
    N, K, N_DOMAINS = 8, 3, 4
    M_L = sum(range(N - K, N))   # 18 non-shared L entries per domain

    key = jax.random.PRNGKey(0)
    k1, k2, k3, k4, k5 = jax.random.split(key, 5)
    params = {
        "L_emb": jax.random.normal(k1, (N_DOMAINS, M_L), jnp.float32),
        "S_emb": jax.random.normal(k2, (N_DOMAINS, K), jnp.float32),
        "shared_bias": jax.random.normal(k3, (N - K,), jnp.float32),
        "bias_emb": jax.random.normal(k4, (N_DOMAINS, K), jnp.float32),
    }

    # B=8 exercises the padded single-block path; B=2048 exercises the multi-step
    # "parallel" grid with full (8,128)-vreg slabs.
    for B in (8, 2048):
        kb1, kb2 = jax.random.split(jax.random.fold_in(k5, B))
        epsilon = jax.random.normal(kb1, (B, N), jnp.float32)
        d = jax.random.randint(kb2, (B,), 0, N_DOMAINS)
        d = d.at[0].set(0)          # make sure the d == 0 (identity F) path runs

        z = f_auto_spa_can_forward(params, epsilon, d, latent_dim=N, k_spa=K)
        z = jax.block_until_ready(z)

        z_ref = _reference_forward(params, epsilon, d, latent_dim=N, k_spa=K)
        assert z.shape == (B, N)
        assert jnp.allclose(z, z_ref, rtol=1e-4, atol=1e-4), (
            f"B={B}: max abs err {jnp.max(jnp.abs(z - z_ref))}")

    print("KERNEL_OK")
</pallas_src>

<mosaic_0001>
module attributes {stable_mosaic.version = 11 : i64} {
  func.func @_f_forward_kernel(%arg0: i32, %arg1: memref<8x1x128xf32, #tpu.memory_space<vmem>>, %arg2: memref<1x128xi32, #tpu.memory_space<vmem>>, %arg3: memref<4x18xf32, #tpu.memory_space<smem>>, %arg4: memref<4x3xf32, #tpu.memory_space<smem>>, %arg5: memref<4x3xf32, #tpu.memory_space<smem>>, %arg6: memref<5xf32, #tpu.memory_space<smem>>, %arg7: memref<8x1x128xf32, #tpu.memory_space<vmem>>) attributes {dimension_semantics = [#tpu.dimension_semantics<parallel>], iteration_bounds = array<i64: 1>, scalar_prefetch = 0 : i64, scratch_operands = 0 : i64, tpu.core_type = #tpu.core_type<tc>, window_params = [{transform_indices = @transform_0, window_bounds = array<i64: 8, 1, 128>}, {transform_indices = @transform_1, window_bounds = array<i64: 1, 128>}, {transform_indices = @transform_2, window_bounds = array<i64: 4, 18>}, {transform_indices = @transform_3, window_bounds = array<i64: 4, 3>}, {transform_indices = @transform_4, window_bounds = array<i64: 4, 3>}, {transform_indices = @transform_5, window_bounds = array<i64: 5>}, {transform_indices = @transform_6, window_bounds = array<i64: 8, 1, 128>}]} {
    %c0 = arith.constant 0 : index
    %c0_0 = arith.constant 0 : index
    %0 = vector.load %arg2[%c0, %c0_0] : memref<1x128xi32, #tpu.memory_space<vmem>>, vector<1x128xi32>
    %c1_i32 = arith.constant 1 : i32
    %1 = vector.broadcast %c1_i32 : i32 to vector<1x128xi32>
    %2 = arith.cmpi eq, %0, %1 : vector<1x128xi32>
    %c2_i32 = arith.constant 2 : i32
    %3 = vector.broadcast %c2_i32 : i32 to vector<1x128xi32>
    %4 = arith.cmpi eq, %0, %3 : vector<1x128xi32>
    %c3_i32 = arith.constant 3 : i32
    %5 = vector.broadcast %c3_i32 : i32 to vector<1x128xi32>
    %6 = arith.cmpi eq, %0, %5 : vector<1x128xi32>
    %c0_1 = arith.constant 0 : index
    %c0_2 = arith.constant 0 : index
    %c0_3 = arith.constant 0 : index
    %7 = vector.load %arg1[%c0_1, %c0_2, %c0_3] : memref<8x1x128xf32, #tpu.memory_space<vmem>>, vector<1x1x128xf32>
    %8 = vector.shape_cast %7 : vector<1x1x128xf32> to vector<1x128xf32>
    %c0_4 = arith.constant 0 : index
    %9 = memref.load %arg6[%c0_4] : memref<5xf32, #tpu.memory_space<smem>>
    %10 = vector.broadcast %9 : f32 to vector<1x128xf32>
    %11 = arith.addf %8, %10 : vector<1x128xf32>
    %c0_5 = arith.constant 0 : index
    %c0_6 = arith.constant 0 : index
    %c0_7 = arith.constant 0 : index
    %12 = vector.load %arg7[%c0_5, %c0_6, %c0_7] : memref<8x1x128xf32, #tpu.memory_space<vmem>>, vector<1x1x128xf32>
    %13 = vector.shape_cast %12 : vector<1x1x128xf32> to vector<1x128xf32>
    %14 = vector.shape_cast %11 : vector<1x128xf32> to vector<1x1x128xf32>
    tpu.vector_store %arg7[%c0_5, %c0_6, %c0_7], %14 {strides = array<i32>} : memref<8x1x128xf32, #tpu.memory_space<vmem>>, vector<1x1x128xf32>,
    %c1 = arith.constant 1 : index
    %c0_8 = arith.constant 0 : index
    %c0_9 = arith.constant 0 : index
    %15 = vector.load %arg1[%c1, %c0_8, %c0_9] : memref<8x1x128xf32, #tpu.memory_space<vmem>>, vector<1x1x128xf32>
    %16 = vector.shape_cast %15 : vector<1x1x128xf32> to vector<1x128xf32>
    %c1_10 = arith.constant 1 : index
    %17 = memref.load %arg6[%c1_10] : memref<5xf32, #tpu.memory_space<smem>>
    %18 = vector.broadcast %17 : f32 to vector<1x128xf32>
    %19 = arith.addf %16, %18 : vector<1x128xf32>
    %c1_11 = arith.constant 1 : index
    %c0_12 = arith.constant 0 : index
    %c0_13 = arith.constant 0 : index
    %20 = vector.load %arg7[%c1_11, %c0_12, %c0_13] : memref<8x1x128xf32, #tpu.memory_space<vmem>>, vector<1x1x128xf32>
    %21 = vector.shape_cast %20 : vector<1x1x128xf32> to vector<1x128xf32>
    %22 = vector.shape_cast %19 : vector<1x128xf32> to vector<1x1x128xf32>
    tpu.vector_store %arg7[%c1_11, %c0_12, %c0_13], %22 {strides = array<i32>} : memref<8x1x128xf32, #tpu.memory_space<vmem>>, vector<1x1x128xf32>,
    %c2 = arith.constant 2 : index
    %c0_14 = arith.constant 0 : index
    %c0_15 = arith.constant 0 : index
    %23 = vector.load %arg1[%c2, %c0_14, %c0_15] : memref<8x1x128xf32, #tpu.memory_space<vmem>>, vector<1x1x128xf32>
    %24 = vector.shape_cast %23 : vector<1x1x128xf32> to vector<1x128xf32>
    %c2_16 = arith.constant 2 : index
    %25 = memref.load %arg6[%c2_16] : memref<5xf32, #tpu.memory_space<smem>>
    %26 = vector.broadcast %25 : f32 to vector<1x128xf32>
    %27 = arith.addf %24, %26 : vector<1x128xf32>
    %c2_17 = arith.constant 2 : index
    %c0_18 = arith.constant 0 : index
    %c0_19 = arith.constant 0 : index
    %28 = vector.load %arg7[%c2_17, %c0_18, %c0_19] : memref<8x1x128xf32, #tpu.memory_space<vmem>>, vector<1x1x128xf32>
    %29 = vector.shape_cast %28 : vector<1x1x128xf32> to vector<1x128xf32>
    %30 = vector.shape_cast %27 : vector<1x128xf32> to vector<1x1x128xf32>
    tpu.vector_store %arg7[%c2_17, %c0_18, %c0_19], %30 {strides = array<i32>} : memref<8x1x128xf32, #tpu.memory_space<vmem>>, vector<1x1x128xf32>,
    %c3 = arith.constant 3 : index
    %c0_20 = arith.constant 0 : index
    %c0_21 = arith.constant 0 : index
    %31 = vector.load %arg1[%c3, %c0_20, %c0_21] : memref<8x1x128xf32, #tpu.memory_space<vmem>>, vector<1x1x128xf32>
    %32 = vector.shape_cast %31 : vector<1x1x128xf32> to vector<1x128xf32>
    %c3_22 = arith.constant 3 : index
    %33 = memref.load %arg6[%c3_22] : memref<5xf32, #tpu.memory_space<smem>>
    %34 = vector.broadcast %33 : f32 to vector<1x128xf32>
    %35 = arith.addf %32, %34 : vector<1x128xf32>
    %c3_23 = arith.constant 3 : index
    %c0_24 = arith.constant 0 : index
    %c0_25 = arith.constant 0 : index
    %36 = vector.load %arg7[%c3_23, %c0_24, %c0_25] : memref<8x1x128xf32, #tpu.memory_space<vmem>>, vector<1x1x128xf32>
    %37 = vector.shape_cast %36 : vector<1x1x128xf32> to vector<1x128xf32>
    %38 = vector.shape_cast %35 : vector<1x128xf32> to vector<1x1x128xf32>
    tpu.vector_store %arg7[%c3_23, %c0_24, %c0_25], %38 {strides = array<i32>} : memref<8x1x128xf32, #tpu.memory_space<vmem>>, vector<1x1x128xf32>,
    %c4 = arith.constant 4 : index
    %c0_26 = arith.constant 0 : index
    %c0_27 = arith.constant 0 : index
    %39 = vector.load %arg1[%c4, %c0_26, %c0_27] : memref<8x1x128xf32, #tpu.memory_space<vmem>>, vector<1x1x128xf32>
    %40 = vector.shape_cast %39 : vector<1x1x128xf32> to vector<1x128xf32>
    %c4_28 = arith.constant 4 : index
    %41 = memref.load %arg6[%c4_28] : memref<5xf32, #tpu.memory_space<smem>>
    %42 = vector.broadcast %41 : f32 to vector<1x128xf32>
    %43 = arith.addf %40, %42 : vector<1x128xf32>
    %c4_29 = arith.constant 4 : index
    %c0_30 = arith.constant 0 : index
    %c0_31 = arith.constant 0 : index
    %44 = vector.load %arg7[%c4_29, %c0_30, %c0_31] : memref<8x1x128xf32, #tpu.memory_space<vmem>>, vector<1x1x128xf32>
    %45 = vector.shape_cast %44 : vector<1x1x128xf32> to vector<1x128xf32>
    %46 = vector.shape_cast %43 : vector<1x128xf32> to vector<1x1x128xf32>
    tpu.vector_store %arg7[%c4_29, %c0_30, %c0_31], %46 {strides = array<i32>} : memref<8x1x128xf32, #tpu.memory_space<vmem>>, vector<1x1x128xf32>,
    %cst = arith.constant 1.000000e+00 : f32
    %47 = vector.broadcast %cst : f32 to vector<1x128xf32>
    %c1_32 = arith.constant 1 : index
    %c0_33 = arith.constant 0 : index
    %48 = memref.load %arg4[%c1_32, %c0_33] : memref<4x3xf32, #tpu.memory_space<smem>>
    %49 = vector.broadcast %48 : f32 to vector<1x128xf32>
    %50 = arith.select %2, %49, %47 : vector<1x128xi1>, vector<1x128xf32>
    %c2_34 = arith.constant 2 : index
    %c0_35 = arith.constant 0 : index
    %51 = memref.load %arg4[%c2_34, %c0_35] : memref<4x3xf32, #tpu.memory_space<smem>>
    %52 = vector.broadcast %51 : f32 to vector<1x128xf32>
    %53 = arith.select %4, %52, %50 : vector<1x128xi1>, vector<1x128xf32>
    %c3_36 = arith.constant 3 : index
    %c0_37 = arith.constant 0 : index
    %54 = memref.load %arg4[%c3_36, %c0_37] : memref<4x3xf32, #tpu.memory_space<smem>>
    %55 = vector.broadcast %54 : f32 to vector<1x128xf32>
    %56 = arith.select %6, %55, %53 : vector<1x128xi1>, vector<1x128xf32>
    %c5 = arith.constant 5 : index
    %c0_38 = arith.constant 0 : index
    %c0_39 = arith.constant 0 : index
    %57 = vector.load %arg1[%c5, %c0_38, %c0_39] : memref<8x1x128xf32, #tpu.memory_space<vmem>>, vector<1x1x128xf32>
    %58 = vector.shape_cast %57 : vector<1x1x128xf32> to vector<1x128xf32>
    %59 = arith.mulf %56, %58 : vector<1x128xf32>
    %cst_40 = arith.constant 0.000000e+00 : f32
    %60 = vector.broadcast %cst_40 : f32 to vector<1x128xf32>
    %c1_41 = arith.constant 1 : index
    %c0_42 = arith.constant 0 : index
    %61 = memref.load %arg3[%c1_41, %c0_42] : memref<4x18xf32, #tpu.memory_space<smem>>
    %62 = vector.broadcast %61 : f32 to vector<1x128xf32>
    %63 = arith.select %2, %62, %60 : vector<1x128xi1>, vector<1x128xf32>
    %c2_43 = arith.constant 2 : index
    %c0_44 = arith.constant 0 : index
    %64 = memref.load %arg3[%c2_43, %c0_44] : memref<4x18xf32, #tpu.memory_space<smem>>
    %65 = vector.broadcast %64 : f32 to vector<1x128xf32>
    %66 = arith.select %4, %65, %63 : vector<1x128xi1>, vector<1x128xf32>
    %c3_45 = arith.constant 3 : index
    %c0_46 = arith.constant 0 : index
    %67 = memref.load %arg3[%c3_45, %c0_46] : memref<4x18xf32, #tpu.memory_space<smem>>
    %68 = vector.broadcast %67 : f32 to vector<1x128xf32>
    %69 = arith.select %6, %68, %66 : vector<1x128xi1>, vector<1x128xf32>
    %c0_47 = arith.constant 0 : index
    %c0_48 = arith.constant 0 : index
    %c0_49 = arith.constant 0 : index
    %70 = vector.load %arg1[%c0_47, %c0_48, %c0_49] : memref<8x1x128xf32, #tpu.memory_space<vmem>>, vector<1x1x128xf32>
    %71 = vector.shape_cast %70 : vector<1x1x128xf32> to vector<1x128xf32>
    %72 = arith.mulf %69, %71 : vector<1x128xf32>
    %73 = arith.addf %59, %72 : vector<1x128xf32>
    %cst_50 = arith.constant 0.000000e+00 : f32
    %74 = vector.broadcast %cst_50 : f32 to vector<1x128xf32>
    %c1_51 = arith.constant 1 : index
    %c1_52 = arith.constant 1 : index
    %75 = memref.load %arg3[%c1_51, %c1_52] : memref<4x18xf32, #tpu.memory_space<smem>>
    %76 = vector.broadcast %75 : f32 to vector<1x128xf32>
    %77 = arith.select %2, %76, %74 : vector<1x128xi1>, vector<1x128xf32>
    %c2_53 = arith.constant 2 : index
    %c1_54 = arith.constant 1 : index
    %78 = memref.load %arg3[%c2_53, %c1_54] : memref<4x18xf32, #tpu.memory_space<smem>>
    %79 = vector.broadcast %78 : f32 to vector<1x128xf32>
    %80 = arith.select %4, %79, %77 : vector<1x128xi1>, vector<1x128xf32>
    %c3_55 = arith.constant 3 : index
    %c1_56 = arith.constant 1 : index
    %81 = memref.load %arg3[%c3_55, %c1_56] : memref<4x18xf32, #tpu.memory_space<smem>>
    %82 = vector.broadcast %81 : f32 to vector<1x128xf32>
    %83 = arith.select %6, %82, %80 : vector<1x128xi1>, vector<1x128xf32>
    %c1_57 = arith.constant 1 : index
    %c0_58 = arith.constant 0 : index
    %c0_59 = arith.constant 0 : index
    %84 = vector.load %arg1[%c1_57, %c0_58, %c0_59] : memref<8x1x128xf32, #tpu.memory_space<vmem>>, vector<1x1x128xf32>
    %85 = vector.shape_cast %84 : vector<1x1x128xf32> to vector<1x128xf32>
    %86 = arith.mulf %83, %85 : vector<1x128xf32>
    %87 = arith.addf %73, %86 : vector<1x128xf32>
    %cst_60 = arith.constant 0.000000e+00 : f32
    %88 = vector.broadcast %cst_60 : f32 to vector<1x128xf32>
    %c1_61 = arith.constant 1 : index
    %c2_62 = arith.constant 2 : index
    %89 = memref.load %arg3[%c1_61, %c2_62] : memref<4x18xf32, #tpu.memory_space<smem>>
    %90 = vector.broadcast %89 : f32 to vector<1x128xf32>
    %91 = arith.select %2, %90, %88 : vector<1x128xi1>, vector<1x128xf32>
    %c2_63 = arith.constant 2 : index
    %c2_64 = arith.constant 2 : index
    %92 = memref.load %arg3[%c2_63, %c2_64] : memref<4x18xf32, #tpu.memory_space<smem>>
    %93 = vector.broadcast %92 : f32 to vector<1x128xf32>
    %94 = arith.select %4, %93, %91 : vector<1x128xi1>, vector<1x128xf32>
    %c3_65 = arith.constant 3 : index
    %c2_66 = arith.constant 2 : index
    %95 = memref.load %arg3[%c3_65, %c2_66] : memref<4x18xf32, #tpu.memory_space<smem>>
    %96 = vector.broadcast %95 : f32 to vector<1x128xf32>
    %97 = arith.select %6, %96, %94 : vector<1x128xi1>, vector<1x128xf32>
    %c2_67 = arith.constant 2 : index
    %c0_68 = arith.constant 0 : index
    %c0_69 = arith.constant 0 : index
    %98 = vector.load %arg1[%c2_67, %c0_68, %c0_69] : memref<8x1x128xf32, #tpu.memory_space<vmem>>, vector<1x1x128xf32>
    %99 = vector.shape_cast %98 : vector<1x1x128xf32> to vector<1x128xf32>
    %100 = arith.mulf %97, %99 : vector<1x128xf32>
    %101 = arith.addf %87, %100 : vector<1x128xf32>
    %cst_70 = arith.constant 0.000000e+00 : f32
    %102 = vector.broadcast %cst_70 : f32 to vector<1x128xf32>
    %c1_71 = arith.constant 1 : index
    %c3_72 = arith.constant 3 : index
    %103 = memref.load %arg3[%c1_71, %c3_72] : memref<4x18xf32, #tpu.memory_space<smem>>
    %104 = vector.broadcast %103 : f32 to vector<1x128xf32>
    %105 = arith.select %2, %104, %102 : vector<1x128xi1>, vector<1x128xf32>
    %c2_73 = arith.constant 2 : index
    %c3_74 = arith.constant 3 : index
    %106 = memref.load %arg3[%c2_73, %c3_74] : memref<4x18xf32, #tpu.memory_space<smem>>
    %107 = vector.broadcast %106 : f32 to vector<1x128xf32>
    %108 = arith.select %4, %107, %105 : vector<1x128xi1>, vector<1x128xf32>
    %c3_75 = arith.constant 3 : index
    %c3_76 = arith.constant 3 : index
    %109 = memref.load %arg3[%c3_75, %c3_76] : memref<4x18xf32, #tpu.memory_space<smem>>
    %110 = vector.broadcast %109 : f32 to vector<1x128xf32>
    %111 = arith.select %6, %110, %108 : vector<1x128xi1>, vector<1x128xf32>
    %c3_77 = arith.constant 3 : index
    %c0_78 = arith.constant 0 : index
    %c0_79 = arith.constant 0 : index
    %112 = vector.load %arg1[%c3_77, %c0_78, %c0_79] : memref<8x1x128xf32, #tpu.memory_space<vmem>>, vector<1x1x128xf32>
    %113 = vector.shape_cast %112 : vector<1x1x128xf32> to vector<1x128xf32>
    %114 = arith.mulf %111, %113 : vector<1x128xf32>
    %115 = arith.addf %101, %114 : vector<1x128xf32>
    %cst_80 = arith.constant 0.000000e+00 : f32
    %116 = vector.broadcast %cst_80 : f32 to vector<1x128xf32>
    %c1_81 = arith.constant 1 : index
    %c4_82 = arith.constant 4 : index
    %117 = memref.load %arg3[%c1_81, %c4_82] : memref<4x18xf32, #tpu.memory_space<smem>>
    %118 = vector.broadcast %117 : f32 to vector<1x128xf32>
    %119 = arith.select %2, %118, %116 : vector<1x128xi1>, vector<1x128xf32>
    %c2_83 = arith.constant 2 : index
    %c4_84 = arith.constant 4 : index
    %120 = memref.load %arg3[%c2_83, %c4_84] : memref<4x18xf32, #tpu.memory_space<smem>>
    %121 = vector.broadcast %120 : f32 to vector<1x128xf32>
    %122 = arith.select %4, %121, %119 : vector<1x128xi1>, vector<1x128xf32>
    %c3_85 = arith.constant 3 : index
    %c4_86 = arith.constant 4 : index
    %123 = memref.load %arg3[%c3_85, %c4_86] : memref<4x18xf32, #tpu.memory_space<smem>>
    %124 = vector.broadcast %123 : f32 to vector<1x128xf32>
    %125 = arith.select %6, %124, %122 : vector<1x128xi1>, vector<1x128xf32>
    %c4_87 = arith.constant 4 : index
    %c0_88 = arith.constant 0 : index
    %c0_89 = arith.constant 0 : index
    %126 = vector.load %arg1[%c4_87, %c0_88, %c0_89] : memref<8x1x128xf32, #tpu.memory_space<vmem>>, vector<1x1x128xf32>
    %127 = vector.shape_cast %126 : vector<1x1x128xf32> to vector<1x128xf32>
    %128 = arith.mulf %125, %127 : vector<1x128xf32>
    %129 = arith.addf %115, %128 : vector<1x128xf32>
    %c0_90 = arith.constant 0 : index
    %c0_91 = arith.constant 0 : index
    %130 = memref.load %arg5[%c0_90, %c0_91] : memref<4x3xf32, #tpu.memory_space<smem>>
    %131 = vector.broadcast %130 : f32 to vector<1x128xf32>
    %c1_92 = arith.constant 1 : index
    %c0_93 = arith.constant 0 : index
    %132 = memref.load %arg5[%c1_92, %c0_93] : memref<4x3xf32, #tpu.memory_space<smem>>
    %133 = vector.broadcast %132 : f32 to vector<1x128xf32>
    %134 = arith.select %2, %133, %131 : vector<1x128xi1>, vector<1x128xf32>
    %c2_94 = arith.constant 2 : index
    %c0_95 = arith.constant 0 : index
    %135 = memref.load %arg5[%c2_94, %c0_95] : memref<4x3xf32, #tpu.memory_space<smem>>
    %136 = vector.broadcast %135 : f32 to vector<1x128xf32>
    %137 = arith.select %4, %136, %134 : vector<1x128xi1>, vector<1x128xf32>
    %c3_96 = arith.constant 3 : index
    %c0_97 = arith.constant 0 : index
    %138 = memref.load %arg5[%c3_96, %c0_97] : memref<4x3xf32, #tpu.memory_space<smem>>
    %139 = vector.broadcast %138 : f32 to vector<1x128xf32>
    %140 = arith.select %6, %139, %137 : vector<1x128xi1>, vector<1x128xf32>
    %141 = arith.addf %129, %140 : vector<1x128xf32>
    %c5_98 = arith.constant 5 : index
    %c0_99 = arith.constant 0 : index
    %c0_100 = arith.constant 0 : index
    %142 = vector.load %arg7[%c5_98, %c0_99, %c0_100] : memref<8x1x128xf32, #tpu.memory_space<vmem>>, vector<1x1x128xf32>
    %143 = vector.shape_cast %142 : vector<1x1x128xf32> to vector<1x128xf32>
    %144 = vector.shape_cast %141 : vector<1x128xf32> to vector<1x1x128xf32>
    tpu.vector_store %arg7[%c5_98, %c0_99, %c0_100], %144 {strides = array<i32>} : memref<8x1x128xf32, #tpu.memory_space<vmem>>, vector<1x1x128xf32>,
    %cst_101 = arith.constant 1.000000e+00 : f32
    %145 = vector.broadcast %cst_101 : f32 to vector<1x128xf32>
    %c1_102 = arith.constant 1 : index
    %c1_103 = arith.constant 1 : index
    %146 = memref.load %arg4[%c1_102, %c1_103] : memref<4x3xf32, #tpu.memory_space<smem>>
    %147 = vector.broadcast %146 : f32 to vector<1x128xf32>
    %148 = arith.select %2, %147, %145 : vector<1x128xi1>, vector<1x128xf32>
    %c2_104 = arith.constant 2 : index
    %c1_105 = arith.constant 1 : index
    %149 = memref.load %arg4[%c2_104, %c1_105] : memref<4x3xf32, #tpu.memory_space<smem>>
    %150 = vector.broadcast %149 : f32 to vector<1x128xf32>
    %151 = arith.select %4, %150, %148 : vector<1x128xi1>, vector<1x128xf32>
    %c3_106 = arith.constant 3 : index
    %c1_107 = arith.constant 1 : index
    %152 = memref.load %arg4[%c3_106, %c1_107] : memref<4x3xf32, #tpu.memory_space<smem>>
    %153 = vector.broadcast %152 : f32 to vector<1x128xf32>
    %154 = arith.select %6, %153, %151 : vector<1x128xi1>, vector<1x128xf32>
    %c6 = arith.constant 6 : index
    %c0_108 = arith.constant 0 : index
    %c0_109 = arith.constant 0 : index
    %155 = vector.load %arg1[%c6, %c0_108, %c0_109] : memref<8x1x128xf32, #tpu.memory_space<vmem>>, vector<1x1x128xf32>
    %156 = vector.shape_cast %155 : vector<1x1x128xf32> to vector<1x128xf32>
    %157 = arith.mulf %154, %156 : vector<1x128xf32>
    %cst_110 = arith.constant 0.000000e+00 : f32
    %158 = vector.broadcast %cst_110 : f32 to vector<1x128xf32>
    %c1_111 = arith.constant 1 : index
    %c5_112 = arith.constant 5 : index
    %159 = memref.load %arg3[%c1_111, %c5_112] : memref<4x18xf32, #tpu.memory_space<smem>>
    %160 = vector.broadcast %159 : f32 to vector<1x128xf32>
    %161 = arith.select %2, %160, %158 : vector<1x128xi1>, vector<1x128xf32>
    %c2_113 = arith.constant 2 : index
    %c5_114 = arith.constant 5 : index
    %162 = memref.load %arg3[%c2_113, %c5_114] : memref<4x18xf32, #tpu.memory_space<smem>>
    %163 = vector.broadcast %162 : f32 to vector<1x128xf32>
    %164 = arith.select %4, %163, %161 : vector<1x128xi1>, vector<1x128xf32>
    %c3_115 = arith.constant 3 : index
    %c5_116 = arith.constant 5 : index
    %165 = memref.load %arg3[%c3_115, %c5_116] : memref<4x18xf32, #tpu.memory_space<smem>>
    %166 = vector.broadcast %165 : f32 to vector<1x128xf32>
    %167 = arith.select %6, %166, %164 : vector<1x128xi1>, vector<1x128xf32>
    %c0_117 = arith.constant 0 : index
    %c0_118 = arith.constant 0 : index
    %c0_119 = arith.constant 0 : index
    %168 = vector.load %arg1[%c0_117, %c0_118, %c0_119] : memref<8x1x128xf32, #tpu.memory_space<vmem>>, vector<1x1x128xf32>
    %169 = vector.shape_cast %168 : vector<1x1x128xf32> to vector<1x128xf32>
    %170 = arith.mulf %167, %169 : vector<1x128xf32>
    %171 = arith.addf %157, %170 : vector<1x128xf32>
    %cst_120 = arith.constant 0.000000e+00 : f32
    %172 = vector.broadcast %cst_120 : f32 to vector<1x128xf32>
    %c1_121 = arith.constant 1 : index
    %c6_122 = arith.constant 6 : index
    %173 = memref.load %arg3[%c1_121, %c6_122] : memref<4x18xf32, #tpu.memory_space<smem>>
    %174 = vector.broadcast %173 : f32 to vector<1x128xf32>
    %175 = arith.select %2, %174, %172 : vector<1x128xi1>, vector<1x128xf32>
    %c2_123 = arith.constant 2 : index
    %c6_124 = arith.constant 6 : index
    %176 = memref.load %arg3[%c2_123, %c6_124] : memref<4x18xf32, #tpu.memory_space<smem>>
    %177 = vector.broadcast %176 : f32 to vector<1x128xf32>
    %178 = arith.select %4, %177, %175 : vector<1x128xi1>, vector<1x128xf32>
    %c3_125 = arith.constant 3 : index
    %c6_126 = arith.constant 6 : index
    %179 = memref.load %arg3[%c3_125, %c6_126] : memref<4x18xf32, #tpu.memory_space<smem>>
    %180 = vector.broadcast %179 : f32 to vector<1x128xf32>
    %181 = arith.select %6, %180, %178 : vector<1x128xi1>, vector<1x128xf32>
    %c1_127 = arith.constant 1 : index
    %c0_128 = arith.constant 0 : index
    %c0_129 = arith.constant 0 : index
    %182 = vector.load %arg1[%c1_127, %c0_128, %c0_129] : memref<8x1x128xf32, #tpu.memory_space<vmem>>, vector<1x1x128xf32>
    %183 = vector.shape_cast %182 : vector<1x1x128xf32> to vector<1x128xf32>
    %184 = arith.mulf %181, %183 : vector<1x128xf32>
    %185 = arith.addf %171, %184 : vector<1x128xf32>
    %cst_130 = arith.constant 0.000000e+00 : f32
    %186 = vector.broadcast %cst_130 : f32 to vector<1x128xf32>
    %c1_131 = arith.constant 1 : index
    %c7 = arith.constant 7 : index
    %187 = memref.load %arg3[%c1_131, %c7] : memref<4x18xf32, #tpu.memory_space<smem>>
    %188 = vector.broadcast %187 : f32 to vector<1x128xf32>
    %189 = arith.select %2, %188, %186 : vector<1x128xi1>, vector<1x128xf32>
    %c2_132 = arith.constant 2 : index
    %c7_133 = arith.constant 7 : index
    %190 = memref.load %arg3[%c2_132, %c7_133] : memref<4x18xf32, #tpu.memory_space<smem>>
    %191 = vector.broadcast %190 : f32 to vector<1x128xf32>
    %192 = arith.select %4, %191, %189 : vector<1x128xi1>, vector<1x128xf32>
    %c3_134 = arith.constant 3 : index
    %c7_135 = arith.constant 7 : index
    %193 = memref.load %arg3[%c3_134, %c7_135] : memref<4x18xf32, #tpu.memory_space<smem>>
    %194 = vector.broadcast %193 : f32 to vector<1x128xf32>
    %195 = arith.select %6, %194, %192 : vector<1x128xi1>, vector<1x128xf32>
    %c2_136 = arith.constant 2 : index
    %c0_137 = arith.constant 0 : index
    %c0_138 = arith.constant 0 : index
    %196 = vector.load %arg1[%c2_136, %c0_137, %c0_138] : memref<8x1x128xf32, #tpu.memory_space<vmem>>, vector<1x1x128xf32>
    %197 = vector.shape_cast %196 : vector<1x1x128xf32> to vector<1x128xf32>
    %198 = arith.mulf %195, %197 : vector<1x128xf32>
    %199 = arith.addf %185, %198 : vector<1x128xf32>
    %cst_139 = arith.constant 0.000000e+00 : f32
    %200 = vector.broadcast %cst_139 : f32 to vector<1x128xf32>
    %c1_140 = arith.constant 1 : index
    %c8 = arith.constant 8 : index
    %201 = memref.load %arg3[%c1_140, %c8] : memref<4x18xf32, #tpu.memory_space<smem>>
    %202 = vector.broadcast %201 : f32 to vector<1x128xf32>
    %203 = arith.select %2, %202, %200 : vector<1x128xi1>, vector<1x128xf32>
    %c2_141 = arith.constant 2 : index
    %c8_142 = arith.constant 8 : index
    %204 = memref.load %arg3[%c2_141, %c8_142] : memref<4x18xf32, #tpu.memory_space<smem>>
    %205 = vector.broadcast %204 : f32 to vector<1x128xf32>
    %206 = arith.select %4, %205, %203 : vector<1x128xi1>, vector<1x128xf32>
    %c3_143 = arith.constant 3 : index
    %c8_144 = arith.constant 8 : index
    %207 = memref.load %arg3[%c3_143, %c8_144] : memref<4x18xf32, #tpu.memory_space<smem>>
    %208 = vector.broadcast %207 : f32 to vector<1x128xf32>
    %209 = arith.select %6, %208, %206 : vector<1x128xi1>, vector<1x128xf32>
    %c3_145 = arith.constant 3 : index
    %c0_146 = arith.constant 0 : index
    %c0_147 = arith.constant 0 : index
    %210 = vector.load %arg1[%c3_145, %c0_146, %c0_147] : memref<8x1x128xf32, #tpu.memory_space<vmem>>, vector<1x1x128xf32>
    %211 = vector.shape_cast %210 : vector<1x1x128xf32> to vector<1x128xf32>
    %212 = arith.mulf %209, %211 : vector<1x128xf32>
    %213 = arith.addf %199, %212 : vector<1x128xf32>
    %cst_148 = arith.constant 0.000000e+00 : f32
    %214 = vector.broadcast %cst_148 : f32 to vector<1x128xf32>
    %c1_149 = arith.constant 1 : index
    %c9 = arith.constant 9 : index
    %215 = memref.load %arg3[%c1_149, %c9] : memref<4x18xf32, #tpu.memory_space<smem>>
    %216 = vector.broadcast %215 : f32 to vector<1x128xf32>
    %217 = arith.select %2, %216, %214 : vector<1x128xi1>, vector<1x128xf32>
    %c2_150 = arith.constant 2 : index
    %c9_151 = arith.constant 9 : index
    %218 = memref.load %arg3[%c2_150, %c9_151] : memref<4x18xf32, #tpu.memory_space<smem>>
    %219 = vector.broadcast %218 : f32 to vector<1x128xf32>
    %220 = arith.select %4, %219, %217 : vector<1x128xi1>, vector<1x128xf32>
    %c3_152 = arith.constant 3 : index
    %c9_153 = arith.constant 9 : index
    %221 = memref.load %arg3[%c3_152, %c9_153] : memref<4x18xf32, #tpu.memory_space<smem>>
    %222 = vector.broadcast %221 : f32 to vector<1x128xf32>
    %223 = arith.select %6, %222, %220 : vector<1x128xi1>, vector<1x128xf32>
    %c4_154 = arith.constant 4 : index
    %c0_155 = arith.constant 0 : index
    %c0_156 = arith.constant 0 : index
    %224 = vector.load %arg1[%c4_154, %c0_155, %c0_156] : memref<8x1x128xf32, #tpu.memory_space<vmem>>, vector<1x1x128xf32>
    %225 = vector.shape_cast %224 : vector<1x1x128xf32> to vector<1x128xf32>
    %226 = arith.mulf %223, %225 : vector<1x128xf32>
    %227 = arith.addf %213, %226 : vector<1x128xf32>
    %cst_157 = arith.constant 0.000000e+00 : f32
    %228 = vector.broadcast %cst_157 : f32 to vector<1x128xf32>
    %c1_158 = arith.constant 1 : index
    %c10 = arith.constant 10 : index
    %229 = memref.load %arg3[%c1_158, %c10] : memref<4x18xf32, #tpu.memory_space<smem>>
    %230 = vector.broadcast %229 : f32 to vector<1x128xf32>
    %231 = arith.select %2, %230, %228 : vector<1x128xi1>, vector<1x128xf32>
    %c2_159 = arith.constant 2 : index
    %c10_160 = arith.constant 10 : index
    %232 = memref.load %arg3[%c2_159, %c10_160] : memref<4x18xf32, #tpu.memory_space<smem>>
    %233 = vector.broadcast %232 : f32 to vector<1x128xf32>
    %234 = arith.select %4, %233, %231 : vector<1x128xi1>, vector<1x128xf32>
    %c3_161 = arith.constant 3 : index
    %c10_162 = arith.constant 10 : index
    %235 = memref.load %arg3[%c3_161, %c10_162] : memref<4x18xf32, #tpu.memory_space<smem>>
    %236 = vector.broadcast %235 : f32 to vector<1x128xf32>
    %237 = arith.select %6, %236, %234 : vector<1x128xi1>, vector<1x128xf32>
    %238 = arith.mulf %237, %129 : vector<1x128xf32>
    %239 = arith.addf %227, %238 : vector<1x128xf32>
    %c0_163 = arith.constant 0 : index
    %c1_164 = arith.constant 1 : index
    %240 = memref.load %arg5[%c0_163, %c1_164] : memref<4x3xf32, #tpu.memory_space<smem>>
    %241 = vector.broadcast %240 : f32 to vector<1x128xf32>
    %c1_165 = arith.constant 1 : index
    %c1_166 = arith.constant 1 : index
    %242 = memref.load %arg5[%c1_165, %c1_166] : memref<4x3xf32, #tpu.memory_space<smem>>
    %243 = vector.broadcast %242 : f32 to vector<1x128xf32>
    %244 = arith.select %2, %243, %241 : vector<1x128xi1>, vector<1x128xf32>
    %c2_167 = arith.constant 2 : index
    %c1_168 = arith.constant 1 : index
    %245 = memref.load %arg5[%c2_167, %c1_168] : memref<4x3xf32, #tpu.memory_space<smem>>
    %246 = vector.broadcast %245 : f32 to vector<1x128xf32>
    %247 = arith.select %4, %246, %244 : vector<1x128xi1>, vector<1x128xf32>
    %c3_169 = arith.constant 3 : index
    %c1_170 = arith.constant 1 : index
    %248 = memref.load %arg5[%c3_169, %c1_170] : memref<4x3xf32, #tpu.memory_space<smem>>
    %249 = vector.broadcast %248 : f32 to vector<1x128xf32>
    %250 = arith.select %6, %249, %247 : vector<1x128xi1>, vector<1x128xf32>
    %251 = arith.addf %239, %250 : vector<1x128xf32>
    %c6_171 = arith.constant 6 : index
    %c0_172 = arith.constant 0 : index
    %c0_173 = arith.constant 0 : index
    %252 = vector.load %arg7[%c6_171, %c0_172, %c0_173] : memref<8x1x128xf32, #tpu.memory_space<vmem>>, vector<1x1x128xf32>
    %253 = vector.shape_cast %252 : vector<1x1x128xf32> to vector<1x128xf32>
    %254 = vector.shape_cast %251 : vector<1x128xf32> to vector<1x1x128xf32>
    tpu.vector_store %arg7[%c6_171, %c0_172, %c0_173], %254 {strides = array<i32>} : memref<8x1x128xf32, #tpu.memory_space<vmem>>, vector<1x1x128xf32>,
    %cst_174 = arith.constant 1.000000e+00 : f32
    %255 = vector.broadcast %cst_174 : f32 to vector<1x128xf32>
    %c1_175 = arith.constant 1 : index
    %c2_176 = arith.constant 2 : index
    %256 = memref.load %arg4[%c1_175, %c2_176] : memref<4x3xf32, #tpu.memory_space<smem>>
    %257 = vector.broadcast %256 : f32 to vector<1x128xf32>
    %258 = arith.select %2, %257, %255 : vector<1x128xi1>, vector<1x128xf32>
    %c2_177 = arith.constant 2 : index
    %c2_178 = arith.constant 2 : index
    %259 = memref.load %arg4[%c2_177, %c2_178] : memref<4x3xf32, #tpu.memory_space<smem>>
    %260 = vector.broadcast %259 : f32 to vector<1x128xf32>
    %261 = arith.select %4, %260, %258 : vector<1x128xi1>, vector<1x128xf32>
    %c3_179 = arith.constant 3 : index
    %c2_180 = arith.constant 2 : index
    %262 = memref.load %arg4[%c3_179, %c2_180] : memref<4x3xf32, #tpu.memory_space<smem>>
    %263 = vector.broadcast %262 : f32 to vector<1x128xf32>
    %264 = arith.select %6, %263, %261 : vector<1x128xi1>, vector<1x128xf32>
    %c7_181 = arith.constant 7 : index
    %c0_182 = arith.constant 0 : index
    %c0_183 = arith.constant 0 : index
    %265 = vector.load %arg1[%c7_181, %c0_182, %c0_183] : memref<8x1x128xf32, #tpu.memory_space<vmem>>, vector<1x1x128xf32>
    %266 = vector.shape_cast %265 : vector<1x1x128xf32> to vector<1x128xf32>
    %267 = arith.mulf %264, %266 : vector<1x128xf32>
    %cst_184 = arith.constant 0.000000e+00 : f32
    %268 = vector.broadcast %cst_184 : f32 to vector<1x128xf32>
    %c1_185 = arith.constant 1 : index
    %c11 = arith.constant 11 : index
    %269 = memref.load %arg3[%c1_185, %c11] : memref<4x18xf32, #tpu.memory_space<smem>>
    %270 = vector.broadcast %269 : f32 to vector<1x128xf32>
    %271 = arith.select %2, %270, %268 : vector<1x128xi1>, vector<1x128xf32>
    %c2_186 = arith.constant 2 : index
    %c11_187 = arith.constant 11 : index
    %272 = memref.load %arg3[%c2_186, %c11_187] : memref<4x18xf32, #tpu.memory_space<smem>>
    %273 = vector.broadcast %272 : f32 to vector<1x128xf32>
    %274 = arith.select %4, %273, %271 : vector<1x128xi1>, vector<1x128xf32>
    %c3_188 = arith.constant 3 : index
    %c11_189 = arith.constant 11 : index
    %275 = memref.load %arg3[%c3_188, %c11_189] : memref<4x18xf32, #tpu.memory_space<smem>>
    %276 = vector.broadcast %275 : f32 to vector<1x128xf32>
    %277 = arith.select %6, %276, %274 : vector<1x128xi1>, vector<1x128xf32>
    %c0_190 = arith.constant 0 : index
    %c0_191 = arith.constant 0 : index
    %c0_192 = arith.constant 0 : index
    %278 = vector.load %arg1[%c0_190, %c0_191, %c0_192] : memref<8x1x128xf32, #tpu.memory_space<vmem>>, vector<1x1x128xf32>
    %279 = vector.shape_cast %278 : vector<1x1x128xf32> to vector<1x128xf32>
    %280 = arith.mulf %277, %279 : vector<1x128xf32>
    %281 = arith.addf %267, %280 : vector<1x128xf32>
    %cst_193 = arith.constant 0.000000e+00 : f32
    %282 = vector.broadcast %cst_193 : f32 to vector<1x128xf32>
    %c1_194 = arith.constant 1 : index
    %c12 = arith.constant 12 : index
    %283 = memref.load %arg3[%c1_194, %c12] : memref<4x18xf32, #tpu.memory_space<smem>>
    %284 = vector.broadcast %283 : f32 to vector<1x128xf32>
    %285 = arith.select %2, %284, %282 : vector<1x128xi1>, vector<1x128xf32>
    %c2_195 = arith.constant 2 : index
    %c12_196 = arith.constant 12 : index
    %286 = memref.load %arg3[%c2_195, %c12_196] : memref<4x18xf32, #tpu.memory_space<smem>>
    %287 = vector.broadcast %286 : f32 to vector<1x128xf32>
    %288 = arith.select %4, %287, %285 : vector<1x128xi1>, vector<1x128xf32>
    %c3_197 = arith.constant 3 : index
    %c12_198 = arith.constant 12 : index
    %289 = memref.load %arg3[%c3_197, %c12_198] : memref<4x18xf32, #tpu.memory_space<smem>>
    %290 = vector.broadcast %289 : f32 to vector<1x128xf32>
    %291 = arith.select %6, %290, %288 : vector<1x128xi1>, vector<1x128xf32>
    %c1_199 = arith.constant 1 : index
    %c0_200 = arith.constant 0 : index
    %c0_201 = arith.constant 0 : index
    %292 = vector.load %arg1[%c1_199, %c0_200, %c0_201] : memref<8x1x128xf32, #tpu.memory_space<vmem>>, vector<1x1x128xf32>
    %293 = vector.shape_cast %292 : vector<1x1x128xf32> to vector<1x128xf32>
    %294 = arith.mulf %291, %293 : vector<1x128xf32>
    %295 = arith.addf %281, %294 : vector<1x128xf32>
    %cst_202 = arith.constant 0.000000e+00 : f32
    %296 = vector.broadcast %cst_202 : f32 to vector<1x128xf32>
    %c1_203 = arith.constant 1 : index
    %c13 = arith.constant 13 : index
    %297 = memref.load %arg3[%c1_203, %c13] : memref<4x18xf32, #tpu.memory_space<smem>>
    %298 = vector.broadcast %297 : f32 to vector<1x128xf32>
    %299 = arith.select %2, %298, %296 : vector<1x128xi1>, vector<1x128xf32>
    %c2_204 = arith.constant 2 : index
    %c13_205 = arith.constant 13 : index
    %300 = memref.load %arg3[%c2_204, %c13_205] : memref<4x18xf32, #tpu.memory_space<smem>>
    %301 = vector.broadcast %300 : f32 to vector<1x128xf32>
    %302 = arith.select %4, %301, %299 : vector<1x128xi1>, vector<1x128xf32>
    %c3_206 = arith.constant 3 : index
    %c13_207 = arith.constant 13 : index
    %303 = memref.load %arg3[%c3_206, %c13_207] : memref<4x18xf32, #tpu.memory_space<smem>>
    %304 = vector.broadcast %303 : f32 to vector<1x128xf32>
    %305 = arith.select %6, %304, %302 : vector<1x128xi1>, vector<1x128xf32>
    %c2_208 = arith.constant 2 : index
    %c0_209 = arith.constant 0 : index
    %c0_210 = arith.constant 0 : index
    %306 = vector.load %arg1[%c2_208, %c0_209, %c0_210] : memref<8x1x128xf32, #tpu.memory_space<vmem>>, vector<1x1x128xf32>
    %307 = vector.shape_cast %306 : vector<1x1x128xf32> to vector<1x128xf32>
    %308 = arith.mulf %305, %307 : vector<1x128xf32>
    %309 = arith.addf %295, %308 : vector<1x128xf32>
    %cst_211 = arith.constant 0.000000e+00 : f32
    %310 = vector.broadcast %cst_211 : f32 to vector<1x128xf32>
    %c1_212 = arith.constant 1 : index
    %c14 = arith.constant 14 : index
    %311 = memref.load %arg3[%c1_212, %c14] : memref<4x18xf32, #tpu.memory_space<smem>>
    %312 = vector.broadcast %311 : f32 to vector<1x128xf32>
    %313 = arith.select %2, %312, %310 : vector<1x128xi1>, vector<1x128xf32>
    %c2_213 = arith.constant 2 : index
    %c14_214 = arith.constant 14 : index
    %314 = memref.load %arg3[%c2_213, %c14_214] : memref<4x18xf32, #tpu.memory_space<smem>>
    %315 = vector.broadcast %314 : f32 to vector<1x128xf32>
    %316 = arith.select %4, %315, %313 : vector<1x128xi1>, vector<1x128xf32>
    %c3_215 = arith.constant 3 : index
    %c14_216 = arith.constant 14 : index
    %317 = memref.load %arg3[%c3_215, %c14_216] : memref<4x18xf32, #tpu.memory_space<smem>>
    %318 = vector.broadcast %317 : f32 to vector<1x128xf32>
    %319 = arith.select %6, %318, %316 : vector<1x128xi1>, vector<1x128xf32>
    %c3_217 = arith.constant 3 : index
    %c0_218 = arith.constant 0 : index
    %c0_219 = arith.constant 0 : index
    %320 = vector.load %arg1[%c3_217, %c0_218, %c0_219] : memref<8x1x128xf32, #tpu.memory_space<vmem>>, vector<1x1x128xf32>
    %321 = vector.shape_cast %320 : vector<1x1x128xf32> to vector<1x128xf32>
    %322 = arith.mulf %319, %321 : vector<1x128xf32>
    %323 = arith.addf %309, %322 : vector<1x128xf32>
    %cst_220 = arith.constant 0.000000e+00 : f32
    %324 = vector.broadcast %cst_220 : f32 to vector<1x128xf32>
    %c1_221 = arith.constant 1 : index
    %c15 = arith.constant 15 : index
    %325 = memref.load %arg3[%c1_221, %c15] : memref<4x18xf32, #tpu.memory_space<smem>>
    %326 = vector.broadcast %325 : f32 to vector<1x128xf32>
    %327 = arith.select %2, %326, %324 : vector<1x128xi1>, vector<1x128xf32>
    %c2_222 = arith.constant 2 : index
    %c15_223 = arith.constant 15 : index
    %328 = memref.load %arg3[%c2_222, %c15_223] : memref<4x18xf32, #tpu.memory_space<smem>>
    %329 = vector.broadcast %328 : f32 to vector<1x128xf32>
    %330 = arith.select %4, %329, %327 : vector<1x128xi1>, vector<1x128xf32>
    %c3_224 = arith.constant 3 : index
    %c15_225 = arith.constant 15 : index
    %331 = memref.load %arg3[%c3_224, %c15_225] : memref<4x18xf32, #tpu.memory_space<smem>>
    %332 = vector.broadcast %331 : f32 to vector<1x128xf32>
    %333 = arith.select %6, %332, %330 : vector<1x128xi1>, vector<1x128xf32>
    %c4_226 = arith.constant 4 : index
    %c0_227 = arith.constant 0 : index
    %c0_228 = arith.constant 0 : index
    %334 = vector.load %arg1[%c4_226, %c0_227, %c0_228] : memref<8x1x128xf32, #tpu.memory_space<vmem>>, vector<1x1x128xf32>
    %335 = vector.shape_cast %334 : vector<1x1x128xf32> to vector<1x128xf32>
    %336 = arith.mulf %333, %335 : vector<1x128xf32>
    %337 = arith.addf %323, %336 : vector<1x128xf32>
    %cst_229 = arith.constant 0.000000e+00 : f32
    %338 = vector.broadcast %cst_229 : f32 to vector<1x128xf32>
    %c1_230 = arith.constant 1 : index
    %c16 = arith.constant 16 : index
    %339 = memref.load %arg3[%c1_230, %c16] : memref<4x18xf32, #tpu.memory_space<smem>>
    %340 = vector.broadcast %339 : f32 to vector<1x128xf32>
    %341 = arith.select %2, %340, %338 : vector<1x128xi1>, vector<1x128xf32>
    %c2_231 = arith.constant 2 : index
    %c16_232 = arith.constant 16 : index
    %342 = memref.load %arg3[%c2_231, %c16_232] : memref<4x18xf32, #tpu.memory_space<smem>>
    %343 = vector.broadcast %342 : f32 to vector<1x128xf32>
    %344 = arith.select %4, %343, %341 : vector<1x128xi1>, vector<1x128xf32>
    %c3_233 = arith.constant 3 : index
    %c16_234 = arith.constant 16 : index
    %345 = memref.load %arg3[%c3_233, %c16_234] : memref<4x18xf32, #tpu.memory_space<smem>>
    %346 = vector.broadcast %345 : f32 to vector<1x128xf32>
    %347 = arith.select %6, %346, %344 : vector<1x128xi1>, vector<1x128xf32>
    %348 = arith.mulf %347, %129 : vector<1x128xf32>
    %349 = arith.addf %337, %348 : vector<1x128xf32>
    %cst_235 = arith.constant 0.000000e+00 : f32
    %350 = vector.broadcast %cst_235 : f32 to vector<1x128xf32>
    %c1_236 = arith.constant 1 : index
    %c17 = arith.constant 17 : index
    %351 = memref.load %arg3[%c1_236, %c17] : memref<4x18xf32, #tpu.memory_space<smem>>
    %352 = vector.broadcast %351 : f32 to vector<1x128xf32>
    %353 = arith.select %2, %352, %350 : vector<1x128xi1>, vector<1x128xf32>
    %c2_237 = arith.constant 2 : index
    %c17_238 = arith.constant 17 : index
    %354 = memref.load %arg3[%c2_237, %c17_238] : memref<4x18xf32, #tpu.memory_space<smem>>
    %355 = vector.broadcast %354 : f32 to vector<1x128xf32>
    %356 = arith.select %4, %355, %353 : vector<1x128xi1>, vector<1x128xf32>
    %c3_239 = arith.constant 3 : index
    %c17_240 = arith.constant 17 : index
    %357 = memref.load %arg3[%c3_239, %c17_240] : memref<4x18xf32, #tpu.memory_space<smem>>
    %358 = vector.broadcast %357 : f32 to vector<1x128xf32>
    %359 = arith.select %6, %358, %356 : vector<1x128xi1>, vector<1x128xf32>
    %360 = arith.mulf %359, %239 : vector<1x128xf32>
    %361 = arith.addf %349, %360 : vector<1x128xf32>
    %c0_241 = arith.constant 0 : index
    %c2_242 = arith.constant 2 : index
    %362 = memref.load %arg5[%c0_241, %c2_242] : memref<4x3xf32, #tpu.memory_space<smem>>
    %363 = vector.broadcast %362 : f32 to vector<1x128xf32>
    %c1_243 = arith.constant 1 : index
    %c2_244 = arith.constant 2 : index
    %364 = memref.load %arg5[%c1_243, %c2_244] : memref<4x3xf32, #tpu.memory_space<smem>>
    %365 = vector.broadcast %364 : f32 to vector<1x128xf32>
    %366 = arith.select %2, %365, %363 : vector<1x128xi1>, vector<1x128xf32>
    %c2_245 = arith.constant 2 : index
    %c2_246 = arith.constant 2 : index
    %367 = memref.load %arg5[%c2_245, %c2_246] : memref<4x3xf32, #tpu.memory_space<smem>>
    %368 = vector.broadcast %367 : f32 to vector<1x128xf32>
    %369 = arith.select %4, %368, %366 : vector<1x128xi1>, vector<1x128xf32>
    %c3_247 = arith.constant 3 : index
    %c2_248 = arith.constant 2 : index
    %370 = memref.load %arg5[%c3_247, %c2_248] : memref<4x3xf32, #tpu.memory_space<smem>>
    %371 = vector.broadcast %370 : f32 to vector<1x128xf32>
    %372 = arith.select %6, %371, %369 : vector<1x128xi1>, vector<1x128xf32>
    %373 = arith.addf %361, %372 : vector<1x128xf32>
    %c7_249 = arith.constant 7 : index
    %c0_250 = arith.constant 0 : index
    %c0_251 = arith.constant 0 : index
    %374 = vector.load %arg7[%c7_249, %c0_250, %c0_251] : memref<8x1x128xf32, #tpu.memory_space<vmem>>, vector<1x1x128xf32>
    %375 = vector.shape_cast %374 : vector<1x1x128xf32> to vector<1x128xf32>
    %376 = vector.shape_cast %373 : vector<1x128xf32> to vector<1x1x128xf32>
    tpu.vector_store %arg7[%c7_249, %c0_250, %c0_251], %376 {strides = array<i32>} : memref<8x1x128xf32, #tpu.memory_space<vmem>>, vector<1x1x128xf32>,
    return
  }
  func.func @transform_0(%arg0: i32) -> (i32, i32, i32) {
    %c0_i32 = arith.constant 0 : i32
    %c0_i32_0 = arith.constant 0 : i32
    %c0_i32_1 = arith.constant 0 : i32
    return %c0_i32, %arg0, %c0_i32_0 : i32, i32, i32
  }
  func.func @transform_1(%arg0: i32) -> (i32, i32) {
    %c0_i32 = arith.constant 0 : i32
    %c0_i32_0 = arith.constant 0 : i32
    return %arg0, %c0_i32 : i32, i32
  }
  func.func @transform_2(%arg0: i32) -> (i32, i32) {
    %c0_i32 = arith.constant 0 : i32
    %c0_i32_0 = arith.constant 0 : i32
    %c0_i32_1 = arith.constant 0 : i32
    return %c0_i32, %c0_i32_0 : i32, i32
  }
  func.func @transform_3(%arg0: i32) -> (i32, i32) {
    %c0_i32 = arith.constant 0 : i32
    %c0_i32_0 = arith.constant 0 : i32
    %c0_i32_1 = arith.constant 0 : i32
    return %c0_i32, %c0_i32_0 : i32, i32
  }
  func.func @transform_4(%arg0: i32) -> (i32, i32) {
    %c0_i32 = arith.constant 0 : i32
    %c0_i32_0 = arith.constant 0 : i32
    %c0_i32_1 = arith.constant 0 : i32
    return %c0_i32, %c0_i32_0 : i32, i32
  }
  func.func @transform_5(%arg0: i32) -> i32 {
    %c0_i32 = arith.constant 0 : i32
    %c0_i32_0 = arith.constant 0 : i32
    return %c0_i32 : i32
  }
  func.func @transform_6(%arg0: i32) -> (i32, i32, i32) {
    %c0_i32 = arith.constant 0 : i32
    %c0_i32_0 = arith.constant 0 : i32
    %c0_i32_1 = arith.constant 0 : i32
    return %c0_i32, %arg0, %c0_i32_0 : i32, i32, i32
  }
}

</mosaic_0001>

<llo_original>
// kernel: tpu_custom_call.1
$region0: #{tpu_custom_call.1}
  #allocation0 [shape = 'u32[]', space=smem, size = 0x4, offset = 0x4, fixed_abs, tag = 'smem constant byte address 0x4 - core index']
  #allocation1 [shape = 'u32[72,128]{1,0:T(1,128)}', space=vmem, size = 0x9000, scoped, tag = 'internal scratch']
  %s0 = inlined_call_operand.hbm [shape: f32[8,1,128], index: 0, kind: input, shape index: {}]
  %s1 = inlined_call_operand.hbm [shape: s32[1,128], index: 1, kind: input, shape index: {}]
  %s2 = inlined_call_operand.hbm [shape: f32[4,18], index: 2, kind: input, shape index: {}]
  %s3 = inlined_call_operand.hbm [shape: f32[4,3], index: 3, kind: input, shape index: {}]
  %s4 = inlined_call_operand.hbm [shape: f32[4,3], index: 4, kind: input, shape index: {}]
  %s5 = inlined_call_operand.vmem [shape: f32[5], index: 5, kind: input, shape index: {}]
  %s6 = inlined_call_operand.hbm [shape: f32[8,1,128], index: 6, kind: output, shape index: {}]
  %s7 = sld [smem:[#allocation0]]
  $region58: #{tpu_custom_call.1} parent=0
    _
  %s9 = ssub.s32 1, %s7
  %s10 = scalar_select 0, %s9, %s7
  $region1: #{tpu_custom_call.1} parent=0
    #allocation2 [shape = 'u8[4096]{0}', space=vmem, size = 0x1000, scoped, tag = 'input window, operand 0, single buffered']
    #allocation3 [shape = 's32[1]{0}', space=sflag, size = 0x4, scoped, tag = 'scoped memory for tpu_custom_call.1']
    #allocation4 [shape = 's32[1]{0}', space=sflag, size = 0x4, scoped, tag = 'scoped memory for tpu_custom_call.1']
    #allocation5 [shape = 's32[1]{0}', space=sflag, size = 0x4, scoped, tag = 'scoped memory for tpu_custom_call.1']
    #allocation6 [shape = 's32[1]{0}', space=sflag, size = 0x4, scoped, tag = 'scoped memory for tpu_custom_call.1']
    #allocation7 [shape = 'u8[512]{0}', space=vmem, size = 0x400, scoped, tag = 'input window, operand 1, single buffered']
    #allocation8 [shape = 's32[1]{0}', space=sflag, size = 0x4, scoped, tag = 'scoped memory for tpu_custom_call.1']
    #allocation9 [shape = 'u8[2048]{0}', space=smem, size = 0x800, scoped, tag = 'input window, operand 2, single buffered']
    #allocation10 [shape = 'u8[2048]{0}', space=smem, size = 0x800, scoped, tag = 'input window, operand 3, single buffered']
    #allocation11 [shape = 's32[1]{0}', space=sflag, size = 0x4, scoped, tag = 'scoped memory for tpu_custom_call.1']
    #allocation12 [shape = 'u8[2048]{0}', space=smem, size = 0x800, scoped, tag = 'input window, operand 4, single buffered']
    #allocation13 [shape = 'u8[512]{0}', space=smem, size = 0x200, scoped, tag = 'input window, operand 5, single buffered']
    #allocation14 [shape = 'u8[4096]{0}', space=vmem, size = 0x1000, scoped, tag = 'output window, operand 0, single buffered']
    %11 = vsyncpa [#allocation3], 0
    %12 = vsyncpa [#allocation8], 0
    %13 = vsyncpa [#allocation5], 0
    %14 = vsyncpa [#allocation11], 0
    %15 = vsyncpa [#allocation6], 0
    %16 = vsyncpa [#allocation4], 0
    // Predicated region
    $region2: #{tpu_custom_call.1} parent=1 // pred_check
      _
    $region3: #{tpu_custom_call.1} parent=1 // pred_check_branch
      %18 = sbr.rel (0) target = $region5
    $region4: #{tpu_custom_call.1} parent=1 // pred_region
      %20 = vsyncadd [#allocation3], 0
      %s21 = sshll.u32 %s0, 4
      %s22 = int_to_ptr.hbm [resolvable:$true] %s21
      %s23 = sshll.u32 [#allocation2], 4
      %s24 = int_to_ptr.vmem [resolvable:$true] %s23
      %29 = dma.hbm_to_vmem [thread:$0]  %s22, 128, %s24, [#allocation3], 16, 16, 1
    $region5: #{tpu_custom_call.1} parent=1 // pred_fallthru
      _
    // Predicated region
    $region6: #{tpu_custom_call.1} parent=1 // pred_check
      _
    $region7: #{tpu_custom_call.1} parent=1 // pred_check_branch
      %31 = sbr.rel (0) target = $region9
    $region8: #{tpu_custom_call.1} parent=1 // pred_region
      %33 = vsyncadd [#allocation8], 0
      %s35 = sshll.u32 %s1, 4
      %s36 = int_to_ptr.hbm [resolvable:$true] %s35
      %s37 = sshll.u32 [#allocation7], 4
      %s38 = int_to_ptr.vmem [resolvable:$true] %s37
      %40 = dma.hbm_to_vmem [thread:$0]  %s36, 16, %s38, [#allocation8]
    $region9: #{tpu_custom_call.1} parent=1 // pred_fallthru
      _
    // Predicated region
    $region10: #{tpu_custom_call.1} parent=1 // pred_check
      _
    $region11: #{tpu_custom_call.1} parent=1 // pred_check_branch
      %42 = sbr.rel (0) target = $region13
    $region12: #{tpu_custom_call.1} parent=1 // pred_region
      %44 = vsyncadd [#allocation5], 0
      %s46 = sshll.u32 %s2, 4
      %s47 = int_to_ptr.hbm [resolvable:$true] %s46
      %49 = dma.hbm_to_smem %s47, 64, [#allocation9], [#allocation5]
    $region13: #{tpu_custom_call.1} parent=1 // pred_fallthru
      _
    // Predicated region
    $region14: #{tpu_custom_call.1} parent=1 // pred_check
      _
    $region15: #{tpu_custom_call.1} parent=1 // pred_check_branch
      %51 = sbr.rel (0) target = $region17
    $region16: #{tpu_custom_call.1} parent=1 // pred_region
      %53 = vsyncadd [#allocation11], 0
      %s55 = sshll.u32 %s3, 4
      %s56 = int_to_ptr.hbm [resolvable:$true] %s55
      %58 = dma.hbm_to_smem %s56, 64, [#allocation10], [#allocation11]
    $region17: #{tpu_custom_call.1} parent=1 // pred_fallthru
      _
    // Predicated region
    $region18: #{tpu_custom_call.1} parent=1 // pred_check
      _
    $region19: #{tpu_custom_call.1} parent=1 // pred_check_branch
      %60 = sbr.rel (0) target = $region21
    $region20: #{tpu_custom_call.1} parent=1 // pred_region
      %62 = vsyncadd [#allocation11], 0
      %s64 = sshll.u32 %s4, 4
      %s65 = int_to_ptr.hbm [resolvable:$true] %s64
      %67 = dma.hbm_to_smem %s65, 64, [#allocation12], [#allocation11]
    $region21: #{tpu_custom_call.1} parent=1 // pred_fallthru
      _
    // Predicated region
    $region22: #{tpu_custom_call.1} parent=1 // pred_check
      _
    $region23: #{tpu_custom_call.1} parent=1 // pred_check_branch
      %69 = sbr.rel (0) target = $region25
    $region24: #{tpu_custom_call.1} parent=1 // pred_region
      %71 = vsyncadd [#allocation6], 0
      %s73 = sshll.u32 %s5, 4
      %s74 = int_to_ptr.vmem [resolvable:$true] %s73
      %76 = dma.vmem_to_smem %s74, 16, [#allocation13], [#allocation6]
    $region25: #{tpu_custom_call.1} parent=1 // pred_fallthru
      _
    // Predicated region
    $region26: #{tpu_custom_call.1} parent=1 // pred_check
      _
    $region27: #{tpu_custom_call.1} parent=1 // pred_check_branch
      %78 = sbr.rel (0) target = $region29
    $region28: #{tpu_custom_call.1} parent=1 // pred_region
      %80 = dma.done [#allocation3], 128
    $region29: #{tpu_custom_call.1} parent=1 // pred_fallthru
      _
    // Predicated region
    $region30: #{tpu_custom_call.1} parent=1 // pred_check
      _
    $region31: #{tpu_custom_call.1} parent=1 // pred_check_branch
      %82 = sbr.rel (0) target = $region33
    $region32: #{tpu_custom_call.1} parent=1 // pred_region
      %84 = dma.done [#allocation8], 16
    $region33: #{tpu_custom_call.1} parent=1 // pred_fallthru
      _
    // Predicated region
    $region34: #{tpu_custom_call.1} parent=1 // pred_check
      _
    $region35: #{tpu_custom_call.1} parent=1 // pred_check_branch
      %86 = sbr.rel (0) target = $region37
    $region36: #{tpu_custom_call.1} parent=1 // pred_region
      %88 = dma.done [#allocation5], 64
    $region37: #{tpu_custom_call.1} parent=1 // pred_fallthru
      _
    // Predicated region
    $region38: #{tpu_custom_call.1} parent=1 // pred_check
      _
    $region39: #{tpu_custom_call.1} parent=1 // pred_check_branch
      %90 = sbr.rel (0) target = $region41
    $region40: #{tpu_custom_call.1} parent=1 // pred_region
      %92 = dma.done [#allocation11], 64
    $region41: #{tpu_custom_call.1} parent=1 // pred_fallthru
      _
    // Predicated region
    $region42: #{tpu_custom_call.1} parent=1 // pred_check
      _
    $region43: #{tpu_custom_call.1} parent=1 // pred_check_branch
      %94 = sbr.rel (0) target = $region45
    $region44: #{tpu_custom_call.1} parent=1 // pred_region
      %96 = dma.done [#allocation11], 64
    $region45: #{tpu_custom_call.1} parent=1 // pred_fallthru
      _
    // Predicated region
    $region46: #{tpu_custom_call.1} parent=1 // pred_check
      _
    $region47: #{tpu_custom_call.1} parent=1 // pred_check_branch
      %98 = sbr.rel (0) target = $region49
    $region48: #{tpu_custom_call.1} parent=1 // pred_region
      %100 = dma.done [#allocation6], 16
    $region49: #{tpu_custom_call.1} parent=1 // pred_fallthru
      _
    %101 = sfence
    %v102 = vld [vmem:[#allocation7] sm:$0x1]
    %vm103 = vcmp.eq.s32.totalorder %v102, 1
    %vm104 = vcmp.eq.s32.totalorder %v102, 2
    %vm105 = vcmp.eq.s32.totalorder %v102, 3
    %v106 = vld [vmem:[#allocation2] sm:$0x1]
    %s107 = sld [smem:[#allocation13]]
    %v108 = vstv %s107
    %v109 = vadd.f32 %v106, %v108
    %110 = vst [vmem:[#allocation14] sm:$0x1] %v109
    %s111 = scalar_lea.vmem [#allocation2], 1
    %v112 = vld [vmem:[%s111] sm:$0x1]
    %s113 = sld [smem:[#allocation13 + $0x1]]
    %v114 = vstv %s113
    %v115 = vadd.f32 %v112, %v114
    %s116 = scalar_lea.vmem [#allocation14], 1
    %117 = vst [vmem:[%s116] sm:$0x1] %v115
    %s118 = scalar_lea.vmem [#allocation2], 2
    %v119 = vld [vmem:[%s118] sm:$0x1]
    %s120 = sld [smem:[#allocation13 + $0x2]]
    %v121 = vstv %s120
    %v122 = vadd.f32 %v119, %v121
    %s123 = scalar_lea.vmem [#allocation14], 2
    %124 = vst [vmem:[%s123] sm:$0x1] %v122
    %s125 = scalar_lea.vmem [#allocation2], 3
    %v126 = vld [vmem:[%s125] sm:$0x1]
    %s127 = sld [smem:[#allocation13 + $0x3]]
    %v128 = vstv %s127
    %v129 = vadd.f32 %v126, %v128
    %s130 = scalar_lea.vmem [#allocation14], 3
    %131 = vst [vmem:[%s130] sm:$0x1] %v129
    %s132 = scalar_lea.vmem [#allocation2], 4
    %v133 = vld [vmem:[%s132] sm:$0x1]
    %s134 = sld [smem:[#allocation13 + $0x4]]
    %v135 = vstv %s134
    %v136 = vadd.f32 %v133, %v135
    %s137 = scalar_lea.vmem [#allocation14], 4
    %138 = vst [vmem:[%s137] sm:$0x1] %v136
    %s139 = sld [smem:[#allocation10 + $0x80]]
    %v140 = vstv %s139
    %v141 = vsel %vm103, %v140, 1.0
    %s142 = sld [smem:[#allocation10 + $0x100]]
    %v143 = vstv %s142
    %v144 = vsel %vm104, %v143, %v141
    %s145 = sld [smem:[#allocation10 + $0x180]]
    %v146 = vstv %s145
    %v147 = vsel %vm105, %v146, %v144
    %s148 = scalar_lea.vmem [#allocation2], 5
    %v149 = vld [vmem:[%s148] sm:$0x1]
    %v150 = vmul.f32 %v147, %v149
    %s151 = sld [smem:[#allocation9 + $0x80]]
    %v152 = vstv %s151
    %v153 = vsel %vm103, %v152, 0.0
    %s154 = sld [smem:[#allocation9 + $0x100]]
    %v155 = vstv %s154
    %v156 = vsel %vm104, %v155, %v153
    %s157 = sld [smem:[#allocation9 + $0x180]]
    %v158 = vstv %s157
    %v159 = vsel %vm105, %v158, %v156
    %v160 = vld [vmem:[#allocation2] sm:$0x1]
    %v161 = vmul.f32 %v159, %v160
    %v162 = vadd.f32 %v150, %v161
    %s163 = sld [smem:[#allocation9 + $0x81]]
    %v164 = vstv %s163
    %v165 = vsel %vm103, %v164, 0.0
    %s166 = sld [smem:[#allocation9 + $0x101]]
    %v167 = vstv %s166
    %v168 = vsel %vm104, %v167, %v165
    %s169 = sld [smem:[#allocation9 + $0x181]]
    %v170 = vstv %s169
    %v171 = vsel %vm105, %v170, %v168
    %v172 = vld [vmem:[%s111] sm:$0x1]
    %v173 = vmul.f32 %v171, %v172
    %v174 = vadd.f32 %v162, %v173
    %s175 = sld [smem:[#allocation9 + $0x82]]
    %v176 = vstv %s175
    %v177 = vsel %vm103, %v176, 0.0
    %s178 = sld [smem:[#allocation9 + $0x102]]
    %v179 = vstv %s178
    %v180 = vsel %vm104, %v179, %v177
    %s181 = sld [smem:[#allocation9 + $0x182]]
    %v182 = vstv %s181
    %v183 = vsel %vm105, %v182, %v180
    %v184 = vld [vmem:[%s118] sm:$0x1]
    %v185 = vmul.f32 %v183, %v184
    %v186 = vadd.f32 %v174, %v185
    %s187 = sld [smem:[#allocation9 + $0x83]]
    %v188 = vstv %s187
    %v189 = vsel %vm103, %v188, 0.0
    %s190 = sld [smem:[#allocation9 + $0x103]]
    %v191 = vstv %s190
    %v192 = vsel %vm104, %v191, %v189
    %s193 = sld [smem:[#allocation9 + $0x183]]
    %v194 = vstv %s193
    %v195 = vsel %vm105, %v194, %v192
    %v196 = vld [vmem:[%s125] sm:$0x1]
    %v197 = vmul.f32 %v195, %v196
    %v198 = vadd.f32 %v186, %v197
    %s199 = sld [smem:[#allocation9 + $0x84]]
    %v200 = vstv %s199
    %v201 = vsel %vm103, %v200, 0.0
    %s202 = sld [smem:[#allocation9 + $0x104]]
    %v203 = vstv %s202
    %v204 = vsel %vm104, %v203, %v201
    %s205 = sld [smem:[#allocation9 + $0x184]]
    %v206 = vstv %s205
    %v207 = vsel %vm105, %v206, %v204
    %v208 = vld [vmem:[%s132] sm:$0x1]
    %v209 = vmul.f32 %v207, %v208
    %v210 = vadd.f32 %v198, %v209
    %s211 = sld [smem:[#allocation12]]
    %v212 = vstv %s211
    %s213 = sld [smem:[#allocation12 + $0x80]]
    %v214 = vstv %s213
    %v215 = vsel %vm103, %v214, %v212
    %s216 = sld [smem:[#allocation12 + $0x100]]
    %v217 = vstv %s216
    %v218 = vsel %vm104, %v217, %v215
    %s219 = sld [smem:[#allocation12 + $0x180]]
    %v220 = vstv %s219
    %v221 = vsel %vm105, %v220, %v218
    %v222 = vadd.f32 %v210, %v221
    %s223 = scalar_lea.vmem [#allocation14], 5
    %224 = vst [vmem:[%s223] sm:$0x1] %v222
    %s225 = sld [smem:[#allocation10 + $0x81]]
    %v226 = vstv %s225
    %v227 = vsel %vm103, %v226, 1.0
    %s228 = sld [smem:[#allocation10 + $0x101]]
    %v229 = vstv %s228
    %v230 = vsel %vm104, %v229, %v227
    %s231 = sld [smem:[#allocation10 + $0x181]]
    %v232 = vstv %s231
    %v233 = vsel %vm105, %v232, %v230
    %s234 = scalar_lea.vmem [#allocation2], 6
    %v235 = vld [vmem:[%s234] sm:$0x1]
    %v236 = vmul.f32 %v233, %v235
    %s237 = sld [smem:[#allocation9 + $0x85]]
    %v238 = vstv %s237
    %v239 = vsel %vm103, %v238, 0.0
    %s240 = sld [smem:[#allocation9 + $0x105]]
    %v241 = vstv %s240
    %v242 = vsel %vm104, %v241, %v239
    %s243 = sld [smem:[#allocation9 + $0x185]]
    %v244 = vstv %s243
    %v245 = vsel %vm105, %v244, %v242
    %v246 = vld [vmem:[#allocation2] sm:$0x1]
    %v247 = vmul.f32 %v245, %v246
    %v248 = vadd.f32 %v236, %v247
    %s249 = sld [smem:[#allocation9 + $0x86]]
    %v250 = vstv %s249
    %v251 = vsel %vm103, %v250, 0.0
    %s252 = sld [smem:[#allocation9 + $0x106]]
    %v253 = vstv %s252
    %v254 = vsel %vm104, %v253, %v251
    %s255 = sld [smem:[#allocation9 + $0x186]]
    %v256 = vstv %s255
    %v257 = vsel %vm105, %v256, %v254
    %v258 = vld [vmem:[%s111] sm:$0x1]
    %v259 = vmul.f32 %v257, %v258
    %v260 = vadd.f32 %v248, %v259
    %s261 = sld [smem:[#allocation9 + $0x87]]
    %v262 = vstv %s261
    %v263 = vsel %vm103, %v262, 0.0
    %s264 = sld [smem:[#allocation9 + $0x107]]
    %v265 = vstv %s264
    %v266 = vsel %vm104, %v265, %v263
    %s267 = sld [smem:[#allocation9 + $0x187]]
    %v268 = vstv %s267
    %v269 = vsel %vm105, %v268, %v266
    %v270 = vld [vmem:[%s118] sm:$0x1]
    %v271 = vmul.f32 %v269, %v270
    %v272 = vadd.f32 %v260, %v271
    %s273 = sld [smem:[#allocation9 + $0x88]]
    %v274 = vstv %s273
    %v275 = vsel %vm103, %v274, 0.0
    %s276 = sld [smem:[#allocation9 + $0x108]]
    %v277 = vstv %s276
    %v278 = vsel %vm104, %v277, %v275
    %s279 = sld [smem:[#allocation9 + $0x188]]
    %v280 = vstv %s279
    %v281 = vsel %vm105, %v280, %v278
    %v282 = vld [vmem:[%s125] sm:$0x1]
    %v283 = vmul.f32 %v281, %v282
    %v284 = vadd.f32 %v272, %v283
    %s285 = sld [smem:[#allocation9 + $0x89]]
    %v286 = vstv %s285
    %v287 = vsel %vm103, %v286, 0.0
    %s288 = sld [smem:[#allocation9 + $0x109]]
    %v289 = vstv %s288
    %v290 = vsel %vm104, %v289, %v287
    %s291 = sld [smem:[#allocation9 + $0x189]]
    %v292 = vstv %s291
    %v293 = vsel %vm105, %v292, %v290
    %v294 = vld [vmem:[%s132] sm:$0x1]
    %v295 = vmul.f32 %v293, %v294
    %v296 = vadd.f32 %v284, %v295
    %s297 = sld [smem:[#allocation9 + $0x8a]]
    %v298 = vstv %s297
    %v299 = vsel %vm103, %v298, 0.0
    %s300 = sld [smem:[#allocation9 + $0x10a]]
    %v301 = vstv %s300
    %v302 = vsel %vm104, %v301, %v299
    %s303 = sld [smem:[#allocation9 + $0x18a]]
    %v304 = vstv %s303
    %v305 = vsel %vm105, %v304, %v302
    %v306 = vmul.f32 %v305, %v210
    %v307 = vadd.f32 %v296, %v306
    %s308 = sld [smem:[#allocation12 + $0x1]]
    %v309 = vstv %s308
    %s310 = sld [smem:[#allocation12 + $0x81]]
    %v311 = vstv %s310
    %v312 = vsel %vm103, %v311, %v309
    %s313 = sld [smem:[#allocation12 + $0x101]]
    %v314 = vstv %s313
    %v315 = vsel %vm104, %v314, %v312
    %s316 = sld [smem:[#allocation12 + $0x181]]
    %v317 = vstv %s316
    %v318 = vsel %vm105, %v317, %v315
    %v319 = vadd.f32 %v307, %v318
    %s320 = scalar_lea.vmem [#allocation14], 6
    %321 = vst [vmem:[%s320] sm:$0x1] %v319
    %s322 = sld [smem:[#allocation10 + $0x82]]
    %v323 = vstv %s322
    %v324 = vsel %vm103, %v323, 1.0
    %s325 = sld [smem:[#allocation10 + $0x102]]
    %v326 = vstv %s325
    %v327 = vsel %vm104, %v326, %v324
    %s328 = sld [smem:[#allocation10 + $0x182]]
    %v329 = vstv %s328
    %v330 = vsel %vm105, %v329, %v327
    %s331 = scalar_lea.vmem [#allocation2], 7
    %v332 = vld [vmem:[%s331] sm:$0x1]
    %v333 = vmul.f32 %v330, %v332
    %s334 = sld [smem:[#allocation9 + $0x8b]]
    %v335 = vstv %s334
    %v336 = vsel %vm103, %v335, 0.0
    %s337 = sld [smem:[#allocation9 + $0x10b]]
    %v338 = vstv %s337
    %v339 = vsel %vm104, %v338, %v336
    %s340 = sld [smem:[#allocation9 + $0x18b]]
    %v341 = vstv %s340
    %v342 = vsel %vm105, %v341, %v339
    %v343 = vld [vmem:[#allocation2] sm:$0x1]
    %v344 = vmul.f32 %v342, %v343
    %v345 = vadd.f32 %v333, %v344
    %s346 = sld [smem:[#allocation9 + $0x8c]]
    %v347 = vstv %s346
    %v348 = vsel %vm103, %v347, 0.0
    %s349 = sld [smem:[#allocation9 + $0x10c]]
    %v350 = vstv %s349
    %v351 = vsel %vm104, %v350, %v348
    %s352 = sld [smem:[#allocation9 + $0x18c]]
    %v353 = vstv %s352
    %v354 = vsel %vm105, %v353, %v351
    %v355 = vld [vmem:[%s111] sm:$0x1]
    %v356 = vmul.f32 %v354, %v355
    %v357 = vadd.f32 %v345, %v356
    %s358 = sld [smem:[#allocation9 + $0x8d]]
    %v359 = vstv %s358
    %v360 = vsel %vm103, %v359, 0.0
    %s361 = sld [smem:[#allocation9 + $0x10d]]
    %v362 = vstv %s361
    %v363 = vsel %vm104, %v362, %v360
    %s364 = sld [smem:[#allocation9 + $0x18d]]
    %v365 = vstv %s364
    %v366 = vsel %vm105, %v365, %v363
    %v367 = vld [vmem:[%s118] sm:$0x1]
    %v368 = vmul.f32 %v366, %v367
    %v369 = vadd.f32 %v357, %v368
    %s370 = sld [smem:[#allocation9 + $0x8e]]
    %v371 = vstv %s370
    %v372 = vsel %vm103, %v371, 0.0
    %s373 = sld [smem:[#allocation9 + $0x10e]]
    %v374 = vstv %s373
    %v375 = vsel %vm104, %v374, %v372
    %s376 = sld [smem:[#allocation9 + $0x18e]]
    %v377 = vstv %s376
    %v378 = vsel %vm105, %v377, %v375
    %v379 = vld [vmem:[%s125] sm:$0x1]
    %v380 = vmul.f32 %v378, %v379
    %v381 = vadd.f32 %v369, %v380
    %s382 = sld [smem:[#allocation9 + $0x8f]]
    %v383 = vstv %s382
    %v384 = vsel %vm103, %v383, 0.0
    %s385 = sld [smem:[#allocation9 + $0x10f]]
    %v386 = vstv %s385
    %v387 = vsel %vm104, %v386, %v384
    %s388 = sld [smem:[#allocation9 + $0x18f]]
    %v389 = vstv %s388
    %v390 = vsel %vm105, %v389, %v387
    %v391 = vld [vmem:[%s132] sm:$0x1]
    %v392 = vmul.f32 %v390, %v391
    %v393 = vadd.f32 %v381, %v392
    %s394 = sld [smem:[#allocation9 + $0x90]]
    %v395 = vstv %s394
    %v396 = vsel %vm103, %v395, 0.0
    %s397 = sld [smem:[#allocation9 + $0x110]]
    %v398 = vstv %s397
    %v399 = vsel %vm104, %v398, %v396
    %s400 = sld [smem:[#allocation9 + $0x190]]
    %v401 = vstv %s400
    %v402 = vsel %vm105, %v401, %v399
    %v403 = vmul.f32 %v402, %v210
    %v404 = vadd.f32 %v393, %v403
    %s405 = sld [smem:[#allocation9 + $0x91]]
    %v406 = vstv %s405
    %v407 = vsel %vm103, %v406, 0.0
    %s408 = sld [smem:[#allocation9 + $0x111]]
    %v409 = vstv %s408
    %v410 = vsel %vm104, %v409, %v407
    %s411 = sld [smem:[#allocation9 + $0x191]]
    %v412 = vstv %s411
    %v413 = vsel %vm105, %v412, %v410
    %v414 = vmul.f32 %v413, %v307
    %v415 = vadd.f32 %v404, %v414
    %s416 = sld [smem:[#allocation12 + $0x2]]
    %v417 = vstv %s416
    %s418 = sld [smem:[#allocation12 + $0x82]]
    %v419 = vstv %s418
    %v420 = vsel %vm103, %v419, %v417
    %s421 = sld [smem:[#allocation12 + $0x102]]
    %v422 = vstv %s421
    %v423 = vsel %vm104, %v422, %v420
    %s424 = sld [smem:[#allocation12 + $0x182]]
    %v425 = vstv %s424
    %v426 = vsel %vm105, %v425, %v423
    %v427 = vadd.f32 %v415, %v426
    %s428 = scalar_lea.vmem [#allocation14], 7
    %429 = vst [vmem:[%s428] sm:$0x1] %v427
    // Predicated region
    $region50: #{tpu_custom_call.1} parent=1 // pred_check
      _
    $region51: #{tpu_custom_call.1} parent=1 // pred_check_branch
      %431 = sbr.rel (0) target = $region53
    $region52: #{tpu_custom_call.1} parent=1 // pred_region
      %433 = vsyncadd [#allocation4], 0
      %s434 = sshll.u32 [#allocation14], 4
      %s435 = int_to_ptr.vmem [resolvable:$true] %s434
      %s436 = sshll.u32 %s6, 4
      %s437 = int_to_ptr.hbm [resolvable:$true] %s436
      %442 = dma.vmem_to_hbm [thread:$0]  %s435, 128, %s437, [#allocation4], 16, 16, 1
    $region53: #{tpu_custom_call.1} parent=1 // pred_fallthru
      _
    // Predicated region
    $region54: #{tpu_custom_call.1} parent=1 // pred_check
      _
    $region55: #{tpu_custom_call.1} parent=1 // pred_check_branch
      %444 = sbr.rel (0) target = $region57
    $region56: #{tpu_custom_call.1} parent=1 // pred_region
      %446 = dma.done [#allocation4], 128
    $region57: #{tpu_custom_call.1} parent=1 // pred_fallthru
      _
    %447 = vsyncpa [#allocation3], 1
    %448 = vsyncpa [#allocation8], 1
    %449 = vsyncpa [#allocation4], 1
    %450 = vsyncpa [#allocation5], 1
    %451 = vsyncpa [#allocation11], 1
    %452 = vsyncpa [#allocation6], 1

</llo_original>
